<compile_context>
chip_gen: v5e
topology: v5e:2x2
jax: 0.10.0
libtpu: 0.0.40
codegen_flags: <defaults>
</compile_context>

<pallas_src>
import jax
import jax.numpy as jnp
from jax.experimental import pallas as pl
from jax.experimental.pallas import tpu as pltpu


def _round_up(x, m):
    return (x + m - 1) // m * m


# --------------------------- kernel bodies ---------------------------------

def _fused_predictor_kernel(x_ref, w_ref, b_ref, o_ref):
    """Single K step: o = x @ W_full + b_full (one lane-dense MXU matmul).

    The cast to the weight dtype is done in-kernel (VPU, hidden under the
    MXU), so bf16 compute never costs an extra wrapper-side HBM pass.
    """
    acc = jnp.dot(x_ref[...].astype(w_ref.dtype), w_ref[...],
                  preferred_element_type=jnp.float32)
    o_ref[...] = (acc + b_ref[...]).astype(o_ref.dtype)


def _fused_predictor_kernel_ktiled(x_ref, w_ref, b_ref, o_ref, acc_ref):
    """K-tiled variant: accumulate partial products in an f32 VMEM scratch."""
    k = pl.program_id(1)

    @pl.when(k == 0)
    def _():
        acc_ref[...] = jnp.zeros_like(acc_ref)

    acc_ref[...] += jnp.dot(x_ref[...].astype(w_ref.dtype), w_ref[...],
                            preferred_element_type=jnp.float32)

    @pl.when(k == pl.num_programs(1) - 1)
    def _():
        o_ref[...] = (acc_ref[...] + b_ref[...]).astype(o_ref.dtype)


# --------------------------- init-time param prep --------------------------

def prepare_fused_params(w_cls, b_cls, w_bbox, b_bbox, num_classes,
                         compute_dtype=jnp.float32):
    """One-time fused weight/bias prep (call at model init, cache the result).

    Output columns are [cls_0..cls_{K-1}, (d0 d1 d2 d3) * K, zero padding]
    so the class-agnostic torch.cat of bbox deltas is folded into the weight.

    Returns:
      w_t:   (C, out_pad) weight in compute_dtype (out_pad = roundup(5K, 128))
      b_row: (1, out_pad) float32 bias row.
    """
    out_width = 5 * num_classes
    out_pad = _round_up(out_width, 128)
    w_fused = jnp.concatenate(
        [w_cls, jnp.tile(w_bbox, (num_classes, 1))], axis=0)        # (5K, C)
    b_fused = jnp.concatenate(
        [b_cls, jnp.tile(b_bbox, (num_classes,))], axis=0)          # (5K,)
    w_fused = jnp.pad(w_fused, ((0, out_pad - out_width), (0, 0)))
    b_fused = jnp.pad(b_fused, ((0, out_pad - out_width),))
    w_t = jnp.transpose(w_fused).astype(compute_dtype)              # (C, out_pad)
    b_row = b_fused.reshape(1, out_pad).astype(jnp.float32)         # (1, out_pad)
    return w_t, b_row


# --------------------------- tiling heuristics ------------------------------

def _pick_block_k(c, block_k):
    """Largest 128-multiple divisor of C that is <= block_k (no K padding)."""
    if c <= block_k or c % 128 != 0:
        # TODO(synk): very large C that is not a 128-multiple falls back to a
        # single K step (bigger VMEM block); padding C would need a per-call
        # pad of x which the perf review rules out.
        return c
    tk, d = 0, 128
    while d <= block_k:
        if c % d == 0:
            tk = d
        d += 128
    return tk if tk else c


def _pick_block_n(n, block_n, row_align):
    if n > block_n:
        return block_n
    if n <= row_align:
        return row_align
    # Split into >=2 row tiles so v7x's two TensorCores both get work
    # (no-op on single-TC v5e/v6e).
    return min(block_n, _round_up(pl.cdiv(n, 2), row_align))


# --------------------------- forward ----------------------------------------

def fast_rcnn_predictor_class_agnostic(x, w_t, b_row, num_classes, *,
                                       block_n=512, block_k=2048):
    """Pallas forward of FastRCNNPredictorClassAgnosticRegressor.

    Args:
      x:     (N, C, 1, 1) or (N, C) ROI features, f32 or bf16 (no wrapper-side
             cast/pad; partial row tiles are clipped by the grid).
      w_t, b_row: cached outputs of prepare_fused_params().
      num_classes: number of classes (incl. background).
      block_n: row tile upper bound (raise to 1024 on v6e if desired).
      block_k: channel tile upper bound for large C.

    Returns:
      scores (N, num_classes) f32, bbox_deltas (N, 4*num_classes) f32.
    """
    if x.ndim == 4:
        assert x.shape[2:] == (1, 1), (
            f"x has the wrong shape, expecting the last two dimensions to be "
            f"[1,1] instead of {list(x.shape[2:])}")
    x2 = x.reshape(x.shape[0], -1)                                   # (N, C)
    n, c = x2.shape
    out_pad = w_t.shape[1]
    assert w_t.shape[0] == c, "w_t/x channel mismatch"

    row_align = 16 if x2.dtype.itemsize == 2 else 8
    tn = _pick_block_n(n, block_n, row_align)
    tk = _pick_block_k(c, block_k)
    grid_n = pl.cdiv(n, tn)
    nk = pl.cdiv(c, tk)                # == c // tk exactly when K-tiled

    # VMEM budget: double-buffered streaming blocks + resident weight/bias.
    x_bytes = 2 * tn * tk * x2.dtype.itemsize
    w_bytes = (1 if nk == 1 else 2) * tk * out_pad * w_t.dtype.itemsize
    o_bytes = 2 * tn * out_pad * 4
    acc_bytes = tn * out_pad * 4 if nk > 1 else 0
    needed = x_bytes + w_bytes + o_bytes + acc_bytes + out_pad * 4
    vmem_limit = min(64 << 20, max(16 << 20, int(needed * 1.5) + (2 << 20)))

    out_shape = jax.ShapeDtypeStruct((n, out_pad), jnp.float32)

    if nk == 1:
        grid_spec = pltpu.PrefetchScalarGridSpec(
            num_scalar_prefetch=0,
            grid=(grid_n,),
            in_specs=[
                pl.BlockSpec((tn, c), lambda i: (i, 0)),              # x rows
                pl.BlockSpec((c, out_pad), lambda i: (0, 0),          # resident W
                             pipeline_mode=pl.Buffered(1)),
                pl.BlockSpec((1, out_pad), lambda i: (0, 0),          # resident b
                             pipeline_mode=pl.Buffered(1)),
            ],
            out_specs=pl.BlockSpec((tn, out_pad), lambda i: (i, 0)),
        )
        kernel = _fused_predictor_kernel
        dim_sem = ("parallel",)
    else:
        grid_spec = pltpu.PrefetchScalarGridSpec(
            num_scalar_prefetch=0,
            grid=(grid_n, nk),                                        # k last
            in_specs=[
                pl.BlockSpec((tn, tk), lambda i, k: (i, k)),          # x tile
                pl.BlockSpec((tk, out_pad), lambda i, k: (k, 0)),     # W tile
                pl.BlockSpec((1, out_pad), lambda i, k: (0, 0),       # resident b
                             pipeline_mode=pl.Buffered(1)),
            ],
            out_specs=pl.BlockSpec((tn, out_pad), lambda i, k: (i, 0)),
            scratch_shapes=[pltpu.VMEM((tn, out_pad), jnp.float32)],
        )
        kernel = _fused_predictor_kernel_ktiled
        dim_sem = ("parallel", "arbitrary")

    out = pl.pallas_call(
        kernel,
        out_shape=out_shape,
        grid_spec=grid_spec,
        compiler_params=pltpu.CompilerParams(
            dimension_semantics=dim_sem,
            vmem_limit_bytes=vmem_limit),
    )(x2, w_t, b_row)

    # Split the fused lane-dense output into the module's two outputs.  These
    # column slices are the only post-kernel passes left; out_pad is small
    # (128 for num_classes <= 25) so they are cheap relative to the x stream.
    scores = out[:, :num_classes]
    bbox_deltas = out[:, num_classes:5 * num_classes]
    return scores, bbox_deltas


# --------------------------- reference & test --------------------------------

def _reference(x, w_cls, b_cls, w_bbox, b_bbox, num_classes):
    x2 = x.reshape(x.shape[0], -1)
    scores = x2 @ w_cls.T + b_cls
    bbox = x2 @ w_bbox.T + b_bbox
    bbox_deltas = jnp.concatenate([bbox for _ in range(num_classes)], axis=1)
    return scores, bbox_deltas


def _make_params(key, in_channels, num_classes):
    kwc, kbc, kwb, kbb = jax.random.split(key, 4)
    bound = 1.0 / (in_channels ** 0.5)
    w_cls = jax.random.uniform(kwc, (num_classes, in_channels),
                               minval=-bound, maxval=bound, dtype=jnp.float32)
    b_cls = jax.random.uniform(kbc, (num_classes,),
                               minval=-bound, maxval=bound, dtype=jnp.float32)
    w_bbox = jax.random.uniform(kwb, (4, in_channels),
                                minval=-bound, maxval=bound, dtype=jnp.float32)
    b_bbox = jax.random.uniform(kbb, (4,),
                                minval=-bound, maxval=bound, dtype=jnp.float32)
    return w_cls, b_cls, w_bbox, b_bbox


if __name__ == "__main__":
    root = jax.random.PRNGKey(0)
    k1, k2, k3 = jax.random.split(root, 3)

    # --- Case 1: small head, single K step, (N, C, 1, 1) NCHW input --------
    in_channels, num_classes, batch = 32, 5, 8
    kx, kp = jax.random.split(k1)
    x = jax.random.normal(kx, (batch, in_channels, 1, 1), dtype=jnp.float32)
    w_cls, b_cls, w_bbox, b_bbox = _make_params(kp, in_channels, num_classes)

    # Init-time fused-parameter prep (cached; not on the per-call hot path).
    w_t, b_row = prepare_fused_params(w_cls, b_cls, w_bbox, b_bbox, num_classes)

    ref_s, ref_b = _reference(x, w_cls, b_cls, w_bbox, b_bbox, num_classes)
    scores, bbox_deltas = fast_rcnn_predictor_class_agnostic(
        x, w_t, b_row, num_classes)
    jax.block_until_ready((scores, bbox_deltas))
    assert scores.shape == (batch, num_classes)
    assert bbox_deltas.shape == (batch, 4 * num_classes)
    assert jnp.allclose(scores, ref_s, atol=1e-5, rtol=1e-5)
    assert jnp.allclose(bbox_deltas, ref_b, atol=1e-5, rtol=1e-5)

    # --- Case 2: K-tiled accumulator path + clipped partial row tile -------
    in_channels2, num_classes2, batch2 = 256, 3, 40
    kx2, kp2 = jax.random.split(k2)
    x2_in = jax.random.normal(kx2, (batch2, in_channels2), dtype=jnp.float32)
    p2 = _make_params(kp2, in_channels2, num_classes2)
    w_t2, b_row2 = prepare_fused_params(*p2, num_classes2)
    ref_s2, ref_b2 = _reference(x2_in, *p2, num_classes2)
    s2, b2 = fast_rcnn_predictor_class_agnostic(
        x2_in, w_t2, b_row2, num_classes2, block_k=128)   # forces nk > 1
    jax.block_until_ready((s2, b2))
    assert s2.shape == (batch2, num_classes2)
    assert b2.shape == (batch2, 4 * num_classes2)
    assert jnp.allclose(s2, ref_s2, atol=1e-4, rtol=1e-4)
    assert jnp.allclose(b2, ref_b2, atol=1e-4, rtol=1e-4)

    # --- Case 3: end-to-end bf16 activations (no wrapper-side cast) --------
    x_bf = x.reshape(batch, in_channels).astype(jnp.bfloat16)  # upstream bf16
    w_t_bf, b_row_bf = prepare_fused_params(
        w_cls, b_cls, w_bbox, b_bbox, num_classes, compute_dtype=jnp.bfloat16)
    s_bf, b_bf = fast_rcnn_predictor_class_agnostic(
        x_bf, w_t_bf, b_row_bf, num_classes)
    jax.block_until_ready((s_bf, b_bf))
    assert jnp.allclose(s_bf, ref_s, atol=5e-2, rtol=5e-2)
    assert jnp.allclose(b_bf, ref_b, atol=5e-2, rtol=5e-2)

    print("KERNEL_OK")
</pallas_src>

<mosaic_0001>
module attributes {stable_mosaic.version = 11 : i64} {
  func.func @_fused_predictor_kernel(%arg0: i32, %arg1: memref<8x32xf32, #tpu.memory_space<vmem>>, %arg2: memref<32x128xf32, #tpu.memory_space<vmem>>, %arg3: memref<1x128xf32, #tpu.memory_space<vmem>>, %arg4: memref<8x128xf32, #tpu.memory_space<vmem>>) attributes {dimension_semantics = [#tpu.dimension_semantics<parallel>], iteration_bounds = array<i64: 1>, scalar_prefetch = 0 : i64, scratch_operands = 0 : i64, tpu.core_type = #tpu.core_type<tc>, window_params = [{transform_indices = @transform_0, window_bounds = array<i64: 8, 32>}, {pipeline_mode = #tpu.pipeline_mode<synchronous>, transform_indices = @transform_1, window_bounds = array<i64: 32, 128>}, {pipeline_mode = #tpu.pipeline_mode<synchronous>, transform_indices = @transform_2, window_bounds = array<i64: 1, 128>}, {transform_indices = @transform_3, window_bounds = array<i64: 8, 128>}]} {
    %c0 = arith.constant 0 : index
    %c0_0 = arith.constant 0 : index
    %0 = vector.load %arg1[%c0, %c0_0] : memref<8x32xf32, #tpu.memory_space<vmem>>, vector<8x32xf32>
    %c0_1 = arith.constant 0 : index
    %c0_2 = arith.constant 0 : index
    %1 = vector.load %arg2[%c0_1, %c0_2] : memref<32x128xf32, #tpu.memory_space<vmem>>, vector<32x128xf32>
    %cst = arith.constant dense<0.000000e+00> : vector<8x128xf32>
    %2 = tpu.matmul %0, %1, %cst {dimension_numbers = #tpu.dot_dimension_numbers<[1], [0], [0], [1], [0, 0, 1, 1], [], []>} : vector<8x32xf32>, vector<32x128xf32>, vector<8x128xf32> -> vector<8x128xf32>
    %c0_3 = arith.constant 0 : index
    %c0_4 = arith.constant 0 : index
    %3 = vector.load %arg3[%c0_3, %c0_4] : memref<1x128xf32, #tpu.memory_space<vmem>>, vector<1x128xf32>
    %4 = vector.broadcast %3 : vector<1x128xf32> to vector<8x128xf32>
    %5 = arith.addf %2, %4 : vector<8x128xf32>
    %c0_5 = arith.constant 0 : index
    %c0_6 = arith.constant 0 : index
    %6 = vector.load %arg4[%c0_5, %c0_6] : memref<8x128xf32, #tpu.memory_space<vmem>>, vector<8x128xf32>
    tpu.vector_store %arg4[%c0_5, %c0_6], %5 {strides = array<i32>} : memref<8x128xf32, #tpu.memory_space<vmem>>, vector<8x128xf32>,
    return
  }
  func.func @transform_0(%arg0: i32) -> (i32, i32) {
    %c0_i32 = arith.constant 0 : i32
    %c0_i32_0 = arith.constant 0 : i32
    return %arg0, %c0_i32 : i32, i32
  }
  func.func @transform_1(%arg0: i32) -> (i32, i32) {
    %c0_i32 = arith.constant 0 : i32
    %c0_i32_0 = arith.constant 0 : i32
    %c0_i32_1 = arith.constant 0 : i32
    return %c0_i32, %c0_i32_0 : i32, i32
  }
  func.func @transform_2(%arg0: i32) -> (i32, i32) {
    %c0_i32 = arith.constant 0 : i32
    %c0_i32_0 = arith.constant 0 : i32
    %c0_i32_1 = arith.constant 0 : i32
    return %c0_i32, %c0_i32_0 : i32, i32
  }
  func.func @transform_3(%arg0: i32) -> (i32, i32) {
    %c0_i32 = arith.constant 0 : i32
    %c0_i32_0 = arith.constant 0 : i32
    return %arg0, %c0_i32 : i32, i32
  }
}

</mosaic_0001>

<llo_original>
// kernel: tpu_custom_call.1
$region0: #{tpu_custom_call.1}
  #allocation0 [shape = 'u32[]', space=smem, size = 0x4, offset = 0x4, fixed_abs, tag = 'smem constant byte address 0x4 - core index']
  #allocation1 [shape = 'u32[72,128]{1,0:T(1,128)}', space=vmem, size = 0x9000, scoped, tag = 'internal scratch']
  %s0 = inlined_call_operand.hbm [shape: f32[8,32], index: 0, kind: input, shape index: {}]
  %s1 = inlined_call_operand.hbm [shape: f32[32,128], index: 1, kind: input, shape index: {}]
  %s2 = inlined_call_operand.vmem [shape: f32[1,128], index: 2, kind: input, shape index: {}]
  %s3 = inlined_call_operand.hbm [shape: f32[8,128], index: 3, kind: output, shape index: {}]
  %s4 = sld [smem:[#allocation0]]
  $region30: #{tpu_custom_call.1} parent=0
    _
  %s6 = ssub.s32 1, %s4
  %s7 = scalar_select 0, %s6, %s4
  $region1: #{tpu_custom_call.1} parent=0
    #allocation2 [shape = 'u8[4096]{0}', space=vmem, size = 0x1000, scoped, tag = 'input window, operand 0, single buffered']
    #allocation3 [shape = 's32[1]{0}', space=sflag, size = 0x4, scoped, tag = 'scoped memory for tpu_custom_call.1']
    #allocation4 [shape = 's32[1]{0}', space=sflag, size = 0x4, scoped, tag = 'scoped memory for tpu_custom_call.1']
    #allocation5 [shape = 'u8[16384]{0}', space=vmem, size = 0x4000, scoped, tag = 'input window, operand 1, single buffered']
    #allocation6 [shape = 's32[1]{0}', space=sflag, size = 0x4, scoped, tag = 'scoped memory for tpu_custom_call.1']
    #allocation7 [shape = 'u8[4096]{0}', space=vmem, size = 0x1000, scoped, tag = 'output window, operand 0, single buffered']
    %8 = vsyncpa [#allocation3], 0
    %9 = vsyncpa [#allocation6], 0
    %10 = vsyncpa [#allocation4], 0
    // Predicated region
    $region2: #{tpu_custom_call.1} parent=1 // pred_check
      _
    $region3: #{tpu_custom_call.1} parent=1 // pred_check_branch
      %12 = sbr.rel (0) target = $region5
    $region4: #{tpu_custom_call.1} parent=1 // pred_region
      %14 = vsyncadd [#allocation3], 0
      %s16 = sshll.u32 %s0, 4
      %s17 = int_to_ptr.hbm [resolvable:$true] %s16
      %s18 = sshll.u32 [#allocation2], 4
      %s19 = int_to_ptr.vmem [resolvable:$true] %s18
      %21 = dma.hbm_to_vmem [thread:$0]  %s17, 128, %s19, [#allocation3]
    $region5: #{tpu_custom_call.1} parent=1 // pred_fallthru
      _
    // Predicated region
    $region6: #{tpu_custom_call.1} parent=1 // pred_check
      _
    $region7: #{tpu_custom_call.1} parent=1 // pred_check_branch
      %23 = sbr.rel (0) target = $region9
    $region8: #{tpu_custom_call.1} parent=1 // pred_region
      %25 = vsyncadd [#allocation6], 0
      %s26 = sshll.u32 %s1, 4
      %s27 = int_to_ptr.hbm [resolvable:$true] %s26
      %s28 = sshll.u32 [#allocation5], 4
      %s29 = int_to_ptr.vmem [resolvable:$true] %s28
      %34 = dma.hbm_to_vmem [thread:$0]  %s27, 512, %s29, [#allocation6], 128, 128, 8
    $region9: #{tpu_custom_call.1} parent=1 // pred_fallthru
      _
    // Predicated region
    $region10: #{tpu_custom_call.1} parent=1 // pred_check
      _
    $region11: #{tpu_custom_call.1} parent=1 // pred_check_branch
      %36 = sbr.rel (0) target = $region13
    $region12: #{tpu_custom_call.1} parent=1 // pred_region
      _
    $region13: #{tpu_custom_call.1} parent=1 // pred_fallthru
      _
    // Predicated region
    $region14: #{tpu_custom_call.1} parent=1 // pred_check
      _
    $region15: #{tpu_custom_call.1} parent=1 // pred_check_branch
      %38 = sbr.rel (0) target = $region17
    $region16: #{tpu_custom_call.1} parent=1 // pred_region
      %40 = dma.done [#allocation3], 128
    $region17: #{tpu_custom_call.1} parent=1 // pred_fallthru
      _
    // Predicated region
    $region18: #{tpu_custom_call.1} parent=1 // pred_check
      _
    $region19: #{tpu_custom_call.1} parent=1 // pred_check_branch
      %42 = sbr.rel (0) target = $region21
    $region20: #{tpu_custom_call.1} parent=1 // pred_region
      %44 = dma.done [#allocation6], 512
    $region21: #{tpu_custom_call.1} parent=1 // pred_fallthru
      _
    %v45 = vld [vmem:[#allocation2] sm:$0xff]
    %v46 = vld [vmem:[#allocation5] sm:$0xff]
    %v47 = vld [vmem:[#allocation5 + $0x8] sm:$0xff]
    %v48 = vld [vmem:[#allocation5 + $0x10] sm:$0xff]
    %v49 = vld [vmem:[#allocation5 + $0x18] sm:$0xff]
    %v50 = vld [vmem:[%s2] sm:$0x1]
    %v52 = vperm.slane %v50, 0
    %vm54 = vcmask 261120
    %v56 = vsel %vm54, %v45, 0
    %58 = vmatpush.msra.mxu0 0.0
    %59 = vmatpush.msra.mxu0 0.0
    %60 = vmatpush.msra.mxu0 0.0
    %61 = vmatpush.msra.mxu0 0.0
    %62 = vmatpush.msra.mxu0 0.0
    %63 = vmatpush.msra.mxu0 0.0
    %64 = vmatpush.msra.mxu0 0.0
    %65 = vmatpush.msra.mxu0 0.0
    %66 = vmatpush.msra.mxu0 0.0
    %67 = vmatpush.msra.mxu0 0.0
    %68 = vmatpush.msra.mxu0 0.0
    %69 = vmatpush.msra.mxu0 0.0
    %70 = vmatpush.msra.mxu0 %v49
    %71 = vmatpush.msra.mxu0 %v48
    %72 = vmatpush.msra.mxu0 %v47
    %73 = vmatpush.msra.mxu0 %v46
    %74 = vmatmul.f32.gmra.mxu0 %v56
    %v75 = vpop.f32.mrf.mxu0
    %v76 = vadd.f32 %v52, %v75
    %77 = vdwg.mxu0
    %78 = vst [vmem:[#allocation7] sm:$0xff] %v76
    // Predicated region
    $region22: #{tpu_custom_call.1} parent=1 // pred_check
      _
    $region23: #{tpu_custom_call.1} parent=1 // pred_check_branch
      %80 = sbr.rel (0) target = $region25
    $region24: #{tpu_custom_call.1} parent=1 // pred_region
      %82 = vsyncadd [#allocation4], 0
      %s84 = sshll.u32 [#allocation7], 4
      %s85 = int_to_ptr.vmem [resolvable:$true] %s84
      %s86 = sshll.u32 %s3, 4
      %s87 = int_to_ptr.hbm [resolvable:$true] %s86
      %89 = dma.vmem_to_hbm [thread:$0]  %s85, 128, %s87, [#allocation4]
    $region25: #{tpu_custom_call.1} parent=1 // pred_fallthru
      _
    // Predicated region
    $region26: #{tpu_custom_call.1} parent=1 // pred_check
      _
    $region27: #{tpu_custom_call.1} parent=1 // pred_check_branch
      %91 = sbr.rel (0) target = $region29
    $region28: #{tpu_custom_call.1} parent=1 // pred_region
      %93 = dma.done [#allocation4], 128
    $region29: #{tpu_custom_call.1} parent=1 // pred_fallthru
      _
    %94 = vsyncpa [#allocation3], 1
    %95 = vsyncpa [#allocation6], 1
    %96 = vsyncpa [#allocation4], 1

</llo_original>
